<compile_context>
chip_gen: v5e
topology: v5e:2x2
jax: 0.10.0
libtpu: 0.0.40
codegen_flags: <defaults>
</compile_context>

<pallas_src>
import functools

import jax
import jax.numpy as jnp
from jax import lax
from jax.experimental import pallas as pl
from jax.experimental.pallas import tpu as pltpu


def _round_up(a, b):
    return ((a + b - 1) // b) * b


def _cdiv(a, b):
    return -(-a // b)


_VMEM_LIMIT_CACHE = None


def _vmem_limit():
    """VMEM budget: chip capacity minus ~16 MiB headroom, capped at 100 MiB.
    (v5e/v6e: 128 MiB physical -> 100 MiB; v7x: 64 MiB -> 48 MiB.)"""
    global _VMEM_LIMIT_CACHE
    if _VMEM_LIMIT_CACHE is None:
        try:
            cap = int(pltpu.get_tpu_info().vmem_capacity_bytes)
            _VMEM_LIMIT_CACHE = int(max(min(cap - (16 << 20), 100 << 20),
                                        32 << 20))
        except Exception:
            _VMEM_LIMIT_CACHE = 48 << 20
    return _VMEM_LIMIT_CACHE


def _maybe_buffered_spec(block_shape, index_map, depth=3):
    """BlockSpec with pipeline_mode=pl.Buffered(depth), falling back cleanly
    if this JAX version does not expose the kwarg."""
    if hasattr(pl, "Buffered"):
        try:
            return pl.BlockSpec(block_shape, index_map,
                                pipeline_mode=pl.Buffered(depth))
        except TypeError:
            pass
    return pl.BlockSpec(block_shape, index_map)


# ----------------------------------------------------------------------------
# Kernel 1: fused MLP (+LayerNorm, +residual).  The torch cat(...) input is
# realized as an in-VMEM lane concat feeding a single K = n_in*C matmul.
# Matmul operands are bf16 (f32 accumulation); LN / ReLU / residual in f32.
# ----------------------------------------------------------------------------
def _fused_mlp_kernel(*refs, n_in, n_lin, res_idx):
    data_refs = refs[:n_in]
    w0_ref, w_ref, v_ref, out_ref = refs[n_in:n_in + 4]

    xs = [r[...] for r in data_refs]                 # f32 (rt, C) streams
    res = xs[res_idx]                                # residual stays f32

    # ---- layer 0: single dot with K = n_in*C (concat lives only in VMEM) ---
    xin = jnp.concatenate([v.astype(jnp.bfloat16) for v in xs], axis=-1)
    h = jnp.dot(xin, w0_ref[...], preferred_element_type=jnp.float32)
    h = h + v_ref[pl.ds(0, 1), :]
    if n_lin > 1:
        h = jnp.maximum(h, 0.0)

    # ---- remaining Linear layers ----
    for i in range(1, n_lin):
        h = jnp.dot(h.astype(jnp.bfloat16), w_ref[i - 1],
                    preferred_element_type=jnp.float32)
        h = h + v_ref[pl.ds(i, 1), :]
        if i < n_lin - 1:
            h = jnp.maximum(h, 0.0)

    # ---- LayerNorm (f32 epilogue) + residual (the torch `+=`) ----
    ln_w = v_ref[pl.ds(n_lin, 1), :]
    ln_b = v_ref[pl.ds(n_lin + 1, 1), :]
    mean = jnp.mean(h, axis=-1, keepdims=True)
    var = jnp.mean(jnp.square(h - mean), axis=-1, keepdims=True)
    h = (h - mean) * lax.rsqrt(var + 1e-5) * ln_w + ln_b

    out_ref[...] = res + h


def fused_mlp_ln_residual(inputs, packed_params, *, res_idx, row_tile=4096):
    """inputs: tuple of (rows, C) f32 arrays (the concat pieces).
    packed_params = (w0: (n_in*C, C) bf16, w_rest: (n_lin-1, C, C) bf16,
                     vecs: (n_lin+2, C) f32  [biases, ln_w, ln_b])."""
    w0, w_rest, v_all = packed_params
    rows = inputs[0].shape[0]
    c = v_all.shape[-1]
    n_in = len(inputs)
    n_lin = w_rest.shape[0] + 1

    # Large tiles (step overhead ~0.35us); keep >=2 grid steps for v7x's 2 TCs.
    rt = min(row_tile, _round_up(rows, 8))
    if rows > 8 and _cdiv(rows, rt) < 2:
        rt = _round_up(_cdiv(rows, 2), 8)
    grid = (_cdiv(rows, rt),)          # no jnp.pad: ragged tail is masked

    in_specs = [pl.BlockSpec((rt, c), lambda i: (i, 0)) for _ in range(n_in)]
    in_specs += [pl.BlockSpec(w0.shape, lambda i: (0, 0)),
                 pl.BlockSpec(w_rest.shape, lambda i: (0, 0, 0)),
                 pl.BlockSpec(v_all.shape, lambda i: (0, 0))]

    return pl.pallas_call(
        functools.partial(_fused_mlp_kernel, n_in=n_in, n_lin=n_lin,
                          res_idx=res_idx),
        out_shape=jax.ShapeDtypeStruct((rows, c), jnp.float32),
        grid_spec=pltpu.PrefetchScalarGridSpec(
            num_scalar_prefetch=0,
            grid=grid,
            in_specs=in_specs,
            out_specs=pl.BlockSpec((rt, c), lambda i: (i, 0)),
        ),
        compiler_params=pltpu.CompilerParams(
            dimension_semantics=("parallel",),
            vmem_limit_bytes=_vmem_limit()),
    )(*inputs, w0, w_rest, v_all)


# ----------------------------------------------------------------------------
# Kernel 2: EdgeAggregation(aggr='add') as a dst-sorted segmented scatter.
#   grid = (node_blocks [parallel], max_tiles_per_block [arbitrary]).
#   The edge-tile index_map reads scalar-prefetched (tile_lo, tile_cnt) so a
#   node block only fetches its overlapping edge tiles; off-range steps clamp
#   to one dummy all-padding tile (dst = -1 never matches a node).
#   f32 one-hot x f32 e  ->  exact f32 aggregation (matches torch up to order).
# ----------------------------------------------------------------------------
def _scatter_add_kernel(lo_ref, cnt_ref, dst_ref, e_ref, out_ref):
    b = pl.program_id(0)
    k = pl.program_id(1)

    @pl.when(k == 0)
    def _init():
        out_ref[...] = jnp.zeros_like(out_ref)

    @pl.when(k < cnt_ref[b])
    def _accum():
        tn = out_ref.shape[0]
        te = e_ref.shape[0]
        local = dst_ref[...] - b * tn                        # (1, te) int32
        row_ids = lax.broadcasted_iota(jnp.int32, (tn, te), 0)
        onehot = (local == row_ids).astype(jnp.float32)      # cheap: cmp + cast
        out_ref[...] += jnp.dot(onehot, e_ref[...],
                                preferred_element_type=jnp.float32)


def scatter_add(e, dst, n_nodes, *, edge_tile=2048, node_tile=256):
    n_edges, c = e.shape
    dst = dst.astype(jnp.int32)

    # node blocks (keep >=2 for v7x megacore when possible)
    tn = min(node_tile, _round_up(n_nodes, 8))
    if n_nodes > 8 and _cdiv(n_nodes, tn) < 2:
        tn = _round_up(_cdiv(n_nodes, 2), 8)
    n_rows = _round_up(n_nodes, tn)
    n_blocks = n_rows // tn

    # edge tiles (lane-aligned so the (1, te) dst block is a full-lane block)
    te = _round_up(min(edge_tile, _round_up(n_edges, 128)), 128)
    e_tiles = _cdiv(n_edges, te)
    dummy_tile = e_tiles                       # extra all-padding tile
    total = (e_tiles + 1) * te

    # ---- host side: sort edges by destination, pad with dst = -1 rows ------
    # TODO(synk): fold this O(E*C) gather into the kernel (DMA gather).
    order = jnp.argsort(dst)
    dst_sorted = dst[order]
    order_pad = jnp.concatenate(
        [order, jnp.zeros((total - n_edges,), order.dtype)])
    e_sorted = jnp.take(e, order_pad, axis=0)                   # (total, C)
    dst_pad = jnp.concatenate(
        [dst_sorted,
         jnp.full((total - n_edges,), -1, jnp.int32)]).reshape(1, total)

    # ---- per-node-block overlapping edge-tile ranges (scalar prefetch) -----
    bounds = jnp.arange(n_blocks + 1, dtype=jnp.int32) * tn
    edges_lo = jnp.searchsorted(dst_sorted, bounds[:-1]).astype(jnp.int32)
    edges_hi = jnp.searchsorted(dst_sorted, bounds[1:]).astype(jnp.int32)
    tile_lo = (edges_lo // te).astype(jnp.int32)
    tile_cnt = jnp.where(edges_hi > edges_lo,
                         (edges_hi + te - 1) // te - tile_lo,
                         0).astype(jnp.int32)
    # Static grid bound: needs concrete indices (eager / static graph). Pass
    # an explicit bound here if this ever runs under jit.
    max_k = max(int(jnp.max(tile_cnt)), 1)

    def _tile_idx(b, k, lo_ref, cnt_ref):
        return jnp.where(k < cnt_ref[b], lo_ref[b] + k, dummy_tile)

    dst_spec = pl.BlockSpec(
        (1, te), lambda b, k, lo, cnt: (0, _tile_idx(b, k, lo, cnt)))
    e_spec = _maybe_buffered_spec(
        (te, c), lambda b, k, lo, cnt: (_tile_idx(b, k, lo, cnt), 0), depth=3)
    out_spec = pl.BlockSpec((tn, c), lambda b, k, lo, cnt: (b, 0))

    out = pl.pallas_call(
        _scatter_add_kernel,
        out_shape=jax.ShapeDtypeStruct((n_rows, c), jnp.float32),
        grid_spec=pltpu.PrefetchScalarGridSpec(
            num_scalar_prefetch=2,
            grid=(n_blocks, max_k),
            in_specs=[dst_spec, e_spec],
            out_specs=out_spec,
        ),
        compiler_params=pltpu.CompilerParams(
            dimension_semantics=("parallel", "arbitrary"),
            vmem_limit_bytes=_vmem_limit()),
    )(tile_lo, tile_cnt, dst_pad, e_sorted)

    return out[:n_nodes] if n_rows != n_nodes else out


# ----------------------------------------------------------------------------
# MessagePassingLayer forward
# ----------------------------------------------------------------------------
def message_passing_layer(x, e, edge_index, edge_packed, node_packed,
                          *, row_tile=4096, edge_tile=2048, node_tile=256):
    src = edge_index[0]
    dst = edge_index[1]

    # TODO(synk): in-kernel DMA gather of x[src]/x[dst] (see header).
    x_src = jnp.take(x, src, axis=0)
    x_dst = jnp.take(x, dst, axis=0)

    # e += edge_updater(cat(x[src], x[dst], e))
    e_new = fused_mlp_ln_residual((x_src, x_dst, e), edge_packed,
                                  res_idx=2, row_tile=row_tile)

    # edge_agg = EdgeAggregation(aggr='add')(x, edge_index, e_new)
    edge_agg = scatter_add(e_new, dst, x.shape[0],
                           edge_tile=edge_tile, node_tile=node_tile)

    # x += node_updater(cat(x, edge_agg))
    x_new = fused_mlp_ln_residual((x, edge_agg), node_packed,
                                  res_idx=0, row_tile=row_tile)
    return x_new, e_new


# ----------------------------------------------------------------------------
# Parameter init (matches torch MLP: H+2 Linear layers + LayerNorm) + packing
# ----------------------------------------------------------------------------
def init_mlp_params(key, in_dim, c, n_mlp_hidden_layers):
    ic = [in_dim] + [c] * (n_mlp_hidden_layers + 1)
    oc = [c] * (n_mlp_hidden_layers + 1) + [c]
    params = []
    for fin, fout in zip(ic, oc):
        key, k1, k2 = jax.random.split(key, 3)
        scale = 1.0 / jnp.sqrt(jnp.float32(fin))
        w = jax.random.uniform(k1, (fin, fout), jnp.float32, -scale, scale)
        b = jax.random.uniform(k2, (1, fout), jnp.float32, -scale, scale)
        params += [w, b]
    params += [jnp.ones((1, c), jnp.float32), jnp.zeros((1, c), jnp.float32)]
    return params


def pack_mlp_params(raw_params, c):
    """raw [W1,b1,...,Wn,bn,ln_w,ln_b] -> (w0 (in,C) bf16, w_rest (n-1,C,C)
    bf16, vecs (n+2,C) f32). W0 stays unsplit: layer 0 is one K=in_dim dot."""
    n_lin = (len(raw_params) - 2) // 2
    w0 = raw_params[0].astype(jnp.bfloat16)
    w_rest = jnp.stack([raw_params[2 * i] for i in range(1, n_lin)]
                       ).astype(jnp.bfloat16)
    vecs = [raw_params[2 * i + 1].reshape(c) for i in range(n_lin)]
    vecs += [raw_params[-2].reshape(c), raw_params[-1].reshape(c)]
    return w0, w_rest, jnp.stack(vecs).astype(jnp.float32)


# ----------------------------------------------------------------------------
# References. _mlp_ref matches kernel matmul precision (bf16 operands, f32
# accumulation, f32 LN).  The scatter reference is plain f32 .at[].add —
# the kernel now aggregates in f32 too.
# ----------------------------------------------------------------------------
def _mlp_ref(xin, raw_params):
    n_lin = (len(raw_params) - 2) // 2
    h = xin
    for i in range(n_lin):
        h = jnp.dot(h.astype(jnp.bfloat16),
                    raw_params[2 * i].astype(jnp.bfloat16),
                    preferred_element_type=jnp.float32)
        h = h + raw_params[2 * i + 1]
        if i < n_lin - 1:
            h = jnp.maximum(h, 0.0)
    mean = h.mean(-1, keepdims=True)
    var = ((h - mean) ** 2).mean(-1, keepdims=True)
    return (h - mean) * lax.rsqrt(var + 1e-5) * raw_params[-2] + raw_params[-1]


def _forward_ref(x, e, edge_index, edge_raw, node_raw):
    src, dst = edge_index[0], edge_index[1]
    e2 = e + _mlp_ref(jnp.concatenate([x[src], x[dst], e], 1), edge_raw)
    agg = jnp.zeros_like(x).at[dst].add(e2)
    x2 = x + _mlp_ref(jnp.concatenate([x, agg], 1), node_raw)
    return x2, e2


# ----------------------------------------------------------------------------
if __name__ == "__main__":
    C = 32                 # channels
    H = 1                  # n_mlp_hidden_layers
    N = 64                 # nodes
    E = 128                # edges

    key = jax.random.PRNGKey(0)
    kx, ke, ki, kp1, kp2 = jax.random.split(key, 5)

    x = jax.random.normal(kx, (N, C), jnp.float32)
    e = jax.random.normal(ke, (E, C), jnp.float32)
    edge_index = jax.random.randint(ki, (2, E), 0, N, dtype=jnp.int32)

    edge_raw = init_mlp_params(kp1, 3 * C, C, H)   # edge_updater: input 3C
    node_raw = init_mlp_params(kp2, 2 * C, C, H)   # node_updater: input 2C
    edge_packed = pack_mlp_params(edge_raw, C)
    node_packed = pack_mlp_params(node_raw, C)

    x_out, e_out = message_passing_layer(x, e, edge_index,
                                         edge_packed, node_packed)
    x_out = jax.block_until_ready(x_out)
    e_out = jax.block_until_ready(e_out)

    src, dst = edge_index[0], edge_index[1]

    # ---- per-kernel checks against precision-matched references -----------
    # (only residual difference: dot/sum ordering + occasional 1-ulp bf16
    #  re-rounding of intermediates -> few e-3 worst case)
    e_ref_k = e + _mlp_ref(jnp.concatenate([x[src], x[dst], e], 1), edge_raw)
    assert jnp.allclose(e_out, e_ref_k, atol=5e-3, rtol=5e-3), \
        float(jnp.max(jnp.abs(e_out - e_ref_k)))

    agg_k = scatter_add(e_out, dst, N)                     # same call as inside
    agg_ref = jnp.zeros((N, C), jnp.float32).at[dst].add(e_out)
    assert jnp.allclose(agg_k, agg_ref, atol=1e-5, rtol=1e-5), \
        float(jnp.max(jnp.abs(agg_k - agg_ref)))           # f32 scatter, exact-ish

    x_ref_k = x + _mlp_ref(jnp.concatenate([x, agg_k], 1), node_raw)
    assert jnp.allclose(x_out, x_ref_k, atol=5e-3, rtol=5e-3), \
        float(jnp.max(jnp.abs(x_out - x_ref_k)))

    # ---- end-to-end check vs fully independent reference ------------------
    x_ref, e_ref = _forward_ref(x, e, edge_index, edge_raw, node_raw)
    assert jnp.allclose(e_out, e_ref, atol=2e-2, rtol=2e-2), \
        float(jnp.max(jnp.abs(e_out - e_ref)))
    assert jnp.allclose(x_out, x_ref, atol=2e-2, rtol=2e-2), \
        float(jnp.max(jnp.abs(x_out - x_ref)))

    print("KERNEL_OK")
</pallas_src>

<mosaic_0001>
module attributes {stable_mosaic.version = 11 : i64} {
  func.func @_fused_mlp_kernel(%arg0: i32, %arg1: memref<64x32xf32, #tpu.memory_space<vmem>>, %arg2: memref<64x32xf32, #tpu.memory_space<vmem>>, %arg3: memref<64x32xf32, #tpu.memory_space<vmem>>, %arg4: memref<96x32xbf16, #tpu.memory_space<vmem>>, %arg5: memref<2x32x32xbf16, #tpu.memory_space<vmem>>, %arg6: memref<5x32xf32, #tpu.memory_space<vmem>>, %arg7: memref<64x32xf32, #tpu.memory_space<vmem>>) attributes {dimension_semantics = [#tpu.dimension_semantics<parallel>], iteration_bounds = array<i64: 2>, scalar_prefetch = 0 : i64, scratch_operands = 0 : i64, tpu.core_type = #tpu.core_type<tc>, window_params = [{transform_indices = @transform_0, window_bounds = array<i64: 64, 32>}, {transform_indices = @transform_1, window_bounds = array<i64: 64, 32>}, {transform_indices = @transform_2, window_bounds = array<i64: 64, 32>}, {pipeline_mode = #tpu.pipeline_mode<synchronous>, transform_indices = @transform_3, window_bounds = array<i64: 96, 32>}, {pipeline_mode = #tpu.pipeline_mode<synchronous>, transform_indices = @transform_4, window_bounds = array<i64: 2, 32, 32>}, {pipeline_mode = #tpu.pipeline_mode<synchronous>, transform_indices = @transform_5, window_bounds = array<i64: 5, 32>}, {transform_indices = @transform_6, window_bounds = array<i64: 64, 32>}]} {
    %c0 = arith.constant 0 : index
    %c0_0 = arith.constant 0 : index
    %0 = vector.load %arg1[%c0, %c0_0] : memref<64x32xf32, #tpu.memory_space<vmem>>, vector<64x32xf32>
    %c0_1 = arith.constant 0 : index
    %c0_2 = arith.constant 0 : index
    %1 = vector.load %arg2[%c0_1, %c0_2] : memref<64x32xf32, #tpu.memory_space<vmem>>, vector<64x32xf32>
    %c0_3 = arith.constant 0 : index
    %c0_4 = arith.constant 0 : index
    %2 = vector.load %arg3[%c0_3, %c0_4] : memref<64x32xf32, #tpu.memory_space<vmem>>, vector<64x32xf32>
    %3 = arith.truncf %0 : vector<64x32xf32> to vector<64x32xbf16>
    %4 = arith.truncf %1 : vector<64x32xf32> to vector<64x32xbf16>
    %5 = arith.truncf %2 : vector<64x32xf32> to vector<64x32xbf16>
    %6 = tpu.concatenate %3, %4, %5 in 1 : vector<64x32xbf16>, vector<64x32xbf16>, vector<64x32xbf16> -> vector<64x96xbf16>
    %c0_5 = arith.constant 0 : index
    %c0_6 = arith.constant 0 : index
    %7 = vector.load %arg4[%c0_5, %c0_6] : memref<96x32xbf16, #tpu.memory_space<vmem>>, vector<96x32xbf16>
    %cst = arith.constant dense<0.000000e+00> : vector<64x32xf32>
    %8 = tpu.matmul %6, %7, %cst {dimension_numbers = #tpu.dot_dimension_numbers<[1], [0], [0], [1], [0, 0, 1, 1], [], []>} : vector<64x96xbf16>, vector<96x32xbf16>, vector<64x32xf32> -> vector<64x32xf32>
    %c0_7 = arith.constant 0 : index
    %c0_8 = arith.constant 0 : index
    %9 = vector.load %arg6[%c0_7, %c0_8] : memref<5x32xf32, #tpu.memory_space<vmem>>, vector<1x32xf32>
    %10 = vector.broadcast %9 : vector<1x32xf32> to vector<64x32xf32>
    %11 = arith.addf %8, %10 : vector<64x32xf32>
    %cst_9 = arith.constant 0.000000e+00 : f32
    %12 = vector.broadcast %cst_9 : f32 to vector<64x32xf32>
    %13 = arith.maximumf %11, %12 : vector<64x32xf32>
    %14 = arith.truncf %13 : vector<64x32xf32> to vector<64x32xbf16>
    %c0_10 = arith.constant 0 : index
    %c0_11 = arith.constant 0 : index
    %c0_12 = arith.constant 0 : index
    %15 = vector.load %arg5[%c0_10, %c0_11, %c0_12] : memref<2x32x32xbf16, #tpu.memory_space<vmem>>, vector<1x32x32xbf16>
    %16 = vector.shape_cast %15 : vector<1x32x32xbf16> to vector<32x32xbf16>
    %cst_13 = arith.constant dense<0.000000e+00> : vector<64x32xf32>
    %17 = tpu.matmul %14, %16, %cst_13 {dimension_numbers = #tpu.dot_dimension_numbers<[1], [0], [0], [1], [0, 0, 1, 1], [], []>} : vector<64x32xbf16>, vector<32x32xbf16>, vector<64x32xf32> -> vector<64x32xf32>
    %c1 = arith.constant 1 : index
    %c0_14 = arith.constant 0 : index
    %18 = vector.load %arg6[%c1, %c0_14] : memref<5x32xf32, #tpu.memory_space<vmem>>, vector<1x32xf32>
    %19 = vector.broadcast %18 : vector<1x32xf32> to vector<64x32xf32>
    %20 = arith.addf %17, %19 : vector<64x32xf32>
    %cst_15 = arith.constant 0.000000e+00 : f32
    %21 = vector.broadcast %cst_15 : f32 to vector<64x32xf32>
    %22 = arith.maximumf %20, %21 : vector<64x32xf32>
    %23 = arith.truncf %22 : vector<64x32xf32> to vector<64x32xbf16>
    %c1_16 = arith.constant 1 : index
    %c0_17 = arith.constant 0 : index
    %c0_18 = arith.constant 0 : index
    %24 = vector.load %arg5[%c1_16, %c0_17, %c0_18] : memref<2x32x32xbf16, #tpu.memory_space<vmem>>, vector<1x32x32xbf16>
    %25 = vector.shape_cast %24 : vector<1x32x32xbf16> to vector<32x32xbf16>
    %cst_19 = arith.constant dense<0.000000e+00> : vector<64x32xf32>
    %26 = tpu.matmul %23, %25, %cst_19 {dimension_numbers = #tpu.dot_dimension_numbers<[1], [0], [0], [1], [0, 0, 1, 1], [], []>} : vector<64x32xbf16>, vector<32x32xbf16>, vector<64x32xf32> -> vector<64x32xf32>
    %c2 = arith.constant 2 : index
    %c0_20 = arith.constant 0 : index
    %27 = vector.load %arg6[%c2, %c0_20] : memref<5x32xf32, #tpu.memory_space<vmem>>, vector<1x32xf32>
    %28 = vector.broadcast %27 : vector<1x32xf32> to vector<64x32xf32>
    %29 = arith.addf %26, %28 : vector<64x32xf32>
    %c3 = arith.constant 3 : index
    %c0_21 = arith.constant 0 : index
    %30 = vector.load %arg6[%c3, %c0_21] : memref<5x32xf32, #tpu.memory_space<vmem>>, vector<1x32xf32>
    %c4 = arith.constant 4 : index
    %c0_22 = arith.constant 0 : index
    %31 = vector.load %arg6[%c4, %c0_22] : memref<5x32xf32, #tpu.memory_space<vmem>>, vector<1x32xf32>
    %cst_23 = arith.constant dense<0.000000e+00> : vector<64xf32>
    %32 = vector.multi_reduction <add>, %29, %cst_23 [1] : vector<64x32xf32> to vector<64xf32>
    %33 = vector.shape_cast %32 : vector<64xf32> to vector<64x1xf32>
    %cst_24 = arith.constant 3.200000e+01 : f32
    %34 = vector.broadcast %cst_24 : f32 to vector<64x1xf32>
    %35 = arith.divf %33, %34 : vector<64x1xf32>
    %36 = vector.broadcast %35 : vector<64x1xf32> to vector<64x32xf32>
    %37 = arith.subf %29, %36 : vector<64x32xf32>
    %38 = arith.mulf %37, %37 : vector<64x32xf32>
    %cst_25 = arith.constant dense<0.000000e+00> : vector<64xf32>
    %39 = vector.multi_reduction <add>, %38, %cst_25 [1] : vector<64x32xf32> to vector<64xf32>
    %40 = vector.shape_cast %39 : vector<64xf32> to vector<64x1xf32>
    %cst_26 = arith.constant 3.200000e+01 : f32
    %41 = vector.broadcast %cst_26 : f32 to vector<64x1xf32>
    %42 = arith.divf %40, %41 : vector<64x1xf32>
    %43 = vector.broadcast %35 : vector<64x1xf32> to vector<64x32xf32>
    %44 = arith.subf %29, %43 : vector<64x32xf32>
    %cst_27 = arith.constant 9.99999974E-6 : f32
    %45 = vector.broadcast %cst_27 : f32 to vector<64x1xf32>
    %46 = arith.addf %42, %45 : vector<64x1xf32>
    %47 = math.rsqrt %46 : vector<64x1xf32>
    %48 = vector.broadcast %47 : vector<64x1xf32> to vector<64x32xf32>
    %49 = arith.mulf %44, %48 : vector<64x32xf32>
    %50 = vector.broadcast %30 : vector<1x32xf32> to vector<64x32xf32>
    %51 = arith.mulf %49, %50 : vector<64x32xf32>
    %52 = vector.broadcast %31 : vector<1x32xf32> to vector<64x32xf32>
    %53 = arith.addf %51, %52 : vector<64x32xf32>
    %54 = arith.addf %2, %53 : vector<64x32xf32>
    %c0_28 = arith.constant 0 : index
    %c0_29 = arith.constant 0 : index
    %55 = vector.load %arg7[%c0_28, %c0_29] : memref<64x32xf32, #tpu.memory_space<vmem>>, vector<64x32xf32>
    tpu.vector_store %arg7[%c0_28, %c0_29], %54 {strides = array<i32>} : memref<64x32xf32, #tpu.memory_space<vmem>>, vector<64x32xf32>,
    return
  }
  func.func @transform_0(%arg0: i32) -> (i32, i32) {
    %c0_i32 = arith.constant 0 : i32
    %c0_i32_0 = arith.constant 0 : i32
    return %arg0, %c0_i32 : i32, i32
  }
  func.func @transform_1(%arg0: i32) -> (i32, i32) {
    %c0_i32 = arith.constant 0 : i32
    %c0_i32_0 = arith.constant 0 : i32
    return %arg0, %c0_i32 : i32, i32
  }
  func.func @transform_2(%arg0: i32) -> (i32, i32) {
    %c0_i32 = arith.constant 0 : i32
    %c0_i32_0 = arith.constant 0 : i32
    return %arg0, %c0_i32 : i32, i32
  }
  func.func @transform_3(%arg0: i32) -> (i32, i32) {
    %c0_i32 = arith.constant 0 : i32
    %c0_i32_0 = arith.constant 0 : i32
    %c0_i32_1 = arith.constant 0 : i32
    return %c0_i32, %c0_i32_0 : i32, i32
  }
  func.func @transform_4(%arg0: i32) -> (i32, i32, i32) {
    %c0_i32 = arith.constant 0 : i32
    %c0_i32_0 = arith.constant 0 : i32
    %c0_i32_1 = arith.constant 0 : i32
    %c0_i32_2 = arith.constant 0 : i32
    return %c0_i32, %c0_i32_0, %c0_i32_1 : i32, i32, i32
  }
  func.func @transform_5(%arg0: i32) -> (i32, i32) {
    %c0_i32 = arith.constant 0 : i32
    %c0_i32_0 = arith.constant 0 : i32
    %c0_i32_1 = arith.constant 0 : i32
    return %c0_i32, %c0_i32_0 : i32, i32
  }
  func.func @transform_6(%arg0: i32) -> (i32, i32) {
    %c0_i32 = arith.constant 0 : i32
    %c0_i32_0 = arith.constant 0 : i32
    return %arg0, %c0_i32 : i32, i32
  }
}

</mosaic_0001>

<llo_original>
// kernel: tpu_custom_call.1
$region0: #{tpu_custom_call.1}
  #allocation0 [shape = 'u32[]', space=smem, size = 0x4, offset = 0x4, fixed_abs, tag = 'smem constant byte address 0x4 - core index']
  #allocation1 [shape = 'u32[72,128]{1,0:T(1,128)}', space=vmem, size = 0x9000, scoped, tag = 'internal scratch']
  %s0 = inlined_call_operand.vmem [shape: f32[128,32], index: 0, kind: input, shape index: {}]
  %s1 = inlined_call_operand.vmem [shape: f32[128,32], index: 1, kind: input, shape index: {}]
  %s2 = inlined_call_operand.vmem [shape: f32[128,32], index: 2, kind: input, shape index: {}]
  %s3 = inlined_call_operand.vmem [shape: bf16[96,32], index: 3, kind: input, shape index: {}]
  %s4 = inlined_call_operand.vmem [shape: bf16[2,32,32], index: 4, kind: input, shape index: {}]
  %s5 = inlined_call_operand.vmem [shape: f32[5,32], index: 5, kind: input, shape index: {}]
  %s6 = inlined_call_operand.vmem [shape: f32[128,32], index: 6, kind: output, shape index: {}]
  %s7 = sld [smem:[#allocation0]]
  $region57: #{tpu_custom_call.1} parent=0
    _
  %s9 = ssub.s32 1, %s7
  %s10 = scalar_select 0, %s9, %s7
  loop: start=0, step=1, limit=4
  $region2: #{tpu_custom_call.1} parent=0 // loop_pre_header
    _
  $region3: #{tpu_custom_call.1} parent=0 // loop_header
    %s12 = sphi 0, %s16
    %p13 = scmp.ge.s32.totalorder %s12, 4
    %s22 = sphi 0, %s24
    %s25 = sphi 0, %s22
    %s26 = sphi 0, %s25
    %s42 = sphi 0, %s26
    %s48 = sphi 0, %s50
    %s51 = sphi 0, %s48
    %s52 = sphi 0, %s51
    %s68 = sphi 0, %s52
    %s74 = sphi 0, %s76
    %s77 = sphi 0, %s74
    %s78 = sphi 0, %s77
    %s94 = sphi 0, %s78
    %s98 = sphi 0, %s98
    %s100 = sphi 0, %s98
    %s101 = sphi 0, %s100
    %s115 = sphi 0, %s101
    %s119 = sphi 0, %s119
    %s121 = sphi 0, %s119
    %s122 = sphi 0, %s121
    %s136 = sphi 0, %s122
    %s140 = sphi 0, %s140
    %s142 = sphi 0, %s140
    %s143 = sphi 0, %s142
    %s157 = sphi 0, %s143
    %s163 = sphi 0, %s165
    %s166 = sphi 0, %s163
    %s167 = sphi 0, %s166
    %s183 = sphi 0, %s167
  $region4: #{tpu_custom_call.1} parent=0 // loop_header_branch
    %15 = sbr.rel (%p13) target = $region8
  $region5: #{tpu_custom_call.1} parent=0 // loop_body
    %s17 = ssub.s32 %s12, 1
    %s18 = ssub.s32 %s12, 2
    %s19 = sadd.s32 %s12, 1
    %s20 = ssub.s32 %s12, %s19
    %p21 = scmp.eq.s32.totalorder %s20, 0
    %s23 = sadd.s32 %s22, 1
    %s24 = scalar_select %p21, %s22, %s23
    %p27 = pneg %p21
    %p28 = scmp.eq.s32.totalorder %s12, 1
    %p29 = por %p27, %p28
    %p30 = scmp.ne.s32.totalorder %s22, %s25
    %p31 = scmp.eq.s32.totalorder %s12, 0
    %p32 = por %p30, %p31
    %p33 = scmp.ne.s32.totalorder %s22, %s25
    %p34 = scmp.eq.s32.totalorder %s17, 1
    %p35 = por %p33, %p34
    %p36 = scmp.ne.s32.totalorder %s25, %s26
    %p37 = scmp.eq.s32.totalorder %s17, 0
    %p38 = por %p36, %p37
    %p39 = scmp.ne.s32.totalorder %s25, %s26
    %p40 = scmp.eq.s32.totalorder %s18, 1
    %p41 = por %p39, %p40
    %p43 = scmp.ne.s32.totalorder %s26, %s42
    %p44 = scmp.eq.s32.totalorder %s18, 0
    %p45 = por %p43, %p44
    %s46 = ssub.s32 %s12, %s19
    %p47 = scmp.eq.s32.totalorder %s46, 0
    %s49 = sadd.s32 %s48, 1
    %s50 = scalar_select %p47, %s48, %s49
    %p53 = pneg %p47
    %p54 = scmp.eq.s32.totalorder %s12, 1
    %p55 = por %p53, %p54
    %p56 = scmp.ne.s32.totalorder %s48, %s51
    %p57 = scmp.eq.s32.totalorder %s12, 0
    %p58 = por %p56, %p57
    %p59 = scmp.ne.s32.totalorder %s48, %s51
    %p60 = scmp.eq.s32.totalorder %s17, 1
    %p61 = por %p59, %p60
    %p62 = scmp.ne.s32.totalorder %s51, %s52
    %p63 = scmp.eq.s32.totalorder %s17, 0
    %p64 = por %p62, %p63
    %p65 = scmp.ne.s32.totalorder %s51, %s52
    %p66 = scmp.eq.s32.totalorder %s18, 1
    %p67 = por %p65, %p66
    %p69 = scmp.ne.s32.totalorder %s52, %s68
    %p70 = scmp.eq.s32.totalorder %s18, 0
    %p71 = por %p69, %p70
    %s72 = ssub.s32 %s12, %s19
    %p73 = scmp.eq.s32.totalorder %s72, 0
    %s75 = sadd.s32 %s74, 1
    %s76 = scalar_select %p73, %s74, %s75
    %p79 = pneg %p73
    %p80 = scmp.eq.s32.totalorder %s12, 1
    %p81 = por %p79, %p80
    %p82 = scmp.ne.s32.totalorder %s74, %s77
    %p83 = scmp.eq.s32.totalorder %s12, 0
    %p84 = por %p82, %p83
    %p85 = scmp.ne.s32.totalorder %s74, %s77
    %p86 = scmp.eq.s32.totalorder %s17, 1
    %p87 = por %p85, %p86
    %p88 = scmp.ne.s32.totalorder %s77, %s78
    %p89 = scmp.eq.s32.totalorder %s17, 0
    %p90 = por %p88, %p89
    %p91 = scmp.ne.s32.totalorder %s77, %s78
    %p92 = scmp.eq.s32.totalorder %s18, 1
    %p93 = por %p91, %p92
    %p95 = scmp.ne.s32.totalorder %s78, %s94
    %p96 = scmp.eq.s32.totalorder %s18, 0
    %p97 = por %p95, %p96
    %s99 = sadd.s32 %s98, 1
    %p102 = scmp.eq.s32.totalorder %s12, 1
    %p103 = scmp.ne.s32.totalorder %s98, %s100
    %p104 = scmp.eq.s32.totalorder %s12, 0
    %p105 = por %p103, %p104
    %p106 = scmp.ne.s32.totalorder %s98, %s100
    %p107 = scmp.eq.s32.totalorder %s17, 1
    %p108 = por %p106, %p107
    %p109 = scmp.ne.s32.totalorder %s100, %s101
    %p110 = scmp.eq.s32.totalorder %s17, 0
    %p111 = por %p109, %p110
    %p112 = scmp.ne.s32.totalorder %s100, %s101
    %p113 = scmp.eq.s32.totalorder %s18, 1
    %p114 = por %p112, %p113
    %p116 = scmp.ne.s32.totalorder %s101, %s115
    %p117 = scmp.eq.s32.totalorder %s18, 0
    %p118 = por %p116, %p117
    %s120 = sadd.s32 %s119, 1
    %p123 = scmp.eq.s32.totalorder %s12, 1
    %p124 = scmp.ne.s32.totalorder %s119, %s121
    %p125 = scmp.eq.s32.totalorder %s12, 0
    %p126 = por %p124, %p125
    %p127 = scmp.ne.s32.totalorder %s119, %s121
    %p128 = scmp.eq.s32.totalorder %s17, 1
    %p129 = por %p127, %p128
    %p130 = scmp.ne.s32.totalorder %s121, %s122
    %p131 = scmp.eq.s32.totalorder %s17, 0
    %p132 = por %p130, %p131
    %p133 = scmp.ne.s32.totalorder %s121, %s122
    %p134 = scmp.eq.s32.totalorder %s18, 1
    %p135 = por %p133, %p134
    %p137 = scmp.ne.s32.totalorder %s122, %s136
    %p138 = scmp.eq.s32.totalorder %s18, 0
    %p139 = por %p137, %p138
    %s141 = sadd.s32 %s140, 1
    %p144 = scmp.eq.s32.totalorder %s12, 1
    %p145 = scmp.ne.s32.totalorder %s140, %s142
    %p146 = scmp.eq.s32.totalorder %s12, 0
    %p147 = por %p145, %p146
    %p148 = scmp.ne.s32.totalorder %s140, %s142
    %p149 = scmp.eq.s32.totalorder %s17, 1
    %p150 = por %p148, %p149
    %p151 = scmp.ne.s32.totalorder %s142, %s143
    %p152 = scmp.eq.s32.totalorder %s17, 0
    %p153 = por %p151, %p152
    %p154 = scmp.ne.s32.totalorder %s142, %s143
    %p155 = scmp.eq.s32.totalorder %s18, 1
    %p156 = por %p154, %p155
    %p158 = scmp.ne.s32.totalorder %s143, %s157
    %p159 = scmp.eq.s32.totalorder %s18, 0
    %p160 = por %p158, %p159
    %s161 = ssub.s32 %s12, %s19
    %p162 = scmp.eq.s32.totalorder %s161, 0
    %s164 = sadd.s32 %s163, 1
    %s165 = scalar_select %p162, %s163, %s164
    %p168 = pneg %p162
    %p169 = scmp.eq.s32.totalorder %s12, 1
    %p170 = por %p168, %p169
    %p171 = scmp.ne.s32.totalorder %s163, %s166
    %p172 = scmp.eq.s32.totalorder %s12, 0
    %p173 = por %p171, %p172
    %p174 = scmp.ne.s32.totalorder %s163, %s166
    %p175 = scmp.eq.s32.totalorder %s17, 1
    %p176 = por %p174, %p175
    %p177 = scmp.ne.s32.totalorder %s166, %s167
    %p178 = scmp.eq.s32.totalorder %s17, 0
    %p179 = por %p177, %p178
    %p180 = scmp.ne.s32.totalorder %s166, %s167
    %p181 = scmp.eq.s32.totalorder %s18, 1
    %p182 = por %p180, %p181
    %p184 = scmp.ne.s32.totalorder %s167, %s183
    %p185 = scmp.eq.s32.totalorder %s18, 0
    %p186 = por %p184, %p185
    %p187 = scmp.le.s32.totalorder 1, %s12
    %p188 = scmp.lt.s32.totalorder %s12, 3
    %p189 = pnand %p187, %p188
    %p190 = pneg %p189
    // Predicated region
    $region9: #{tpu_custom_call.1} parent=5 // pred_check
      _
    $region10: #{tpu_custom_call.1} parent=5 // pred_check_branch
      %192 = sbr.rel (%p189) target = $region12
    $region11: #{tpu_custom_call.1} parent=5 // pred_region
      %s193 = ssub.s32 %s12, 1
      // Predicated region
      $region13: #{tpu_custom_call.1} parent=11 // pred_check
        %p194 = pneg %p111
      $region14: #{tpu_custom_call.1} parent=11 // pred_check_branch
        %196 = sbr.rel (%p194) target = $region16
      $region15: #{tpu_custom_call.1} parent=11 // pred_region
        _
      $region16: #{tpu_custom_call.1} parent=11 // pred_fallthru
        _
      // Predicated region
      $region17: #{tpu_custom_call.1} parent=11 // pred_check
        %p197 = pneg %p132
      $region18: #{tpu_custom_call.1} parent=11 // pred_check_branch
        %199 = sbr.rel (%p197) target = $region20
      $region19: #{tpu_custom_call.1} parent=11 // pred_region
        _
      $region20: #{tpu_custom_call.1} parent=11 // pred_fallthru
        _
      // Predicated region
      $region21: #{tpu_custom_call.1} parent=11 // pred_check
        %p200 = pneg %p153
      $region22: #{tpu_custom_call.1} parent=11 // pred_check_branch
        %202 = sbr.rel (%p200) target = $region24
      $region23: #{tpu_custom_call.1} parent=11 // pred_region
        _
      $region24: #{tpu_custom_call.1} parent=11 // pred_fallthru
        _
    $region12: #{tpu_custom_call.1} parent=5 // pred_fallthru
      _
    %p203 = scmp.lt.s32.totalorder %s12, 2
    // Predicated region
    $region25: #{tpu_custom_call.1} parent=5 // pred_check
      %p204 = pneg %p203
    $region26: #{tpu_custom_call.1} parent=5 // pred_check_branch
      %206 = sbr.rel (%p204) target = $region28
    $region27: #{tpu_custom_call.1} parent=5 // pred_region
      // Predicated region
      $region29: #{tpu_custom_call.1} parent=27 // pred_check
        %p207 = pneg %p32
      $region30: #{tpu_custom_call.1} parent=27 // pred_check_branch
        %209 = sbr.rel (%p207) target = $region32
      $region31: #{tpu_custom_call.1} parent=27 // pred_region
        %s210 = smul.u32 8, %s12
        %p211 = scmp.lt.s32.totalorder %s210, 15
        %s212 = scalar_select %p211, %s210, 15
        %s213 = smul.addr %s212, 8
        %s214 = scalar_lea.vmem %s0, %s213
        %s215 = smul.u32 8, %s12
      $region32: #{tpu_custom_call.1} parent=27 // pred_fallthru
        _
      // Predicated region
      $region33: #{tpu_custom_call.1} parent=27 // pred_check
        %p216 = pneg %p58
      $region34: #{tpu_custom_call.1} parent=27 // pred_check_branch
        %218 = sbr.rel (%p216) target = $region36
      $region35: #{tpu_custom_call.1} parent=27 // pred_region
        %s219 = smul.u32 8, %s12
        %p220 = scmp.lt.s32.totalorder %s219, 15
        %s221 = scalar_select %p220, %s219, 15
        %s222 = smul.addr %s221, 8
        %s223 = scalar_lea.vmem %s1, %s222
        %s224 = smul.u32 8, %s12
      $region36: #{tpu_custom_call.1} parent=27 // pred_fallthru
        _
      // Predicated region
      $region37: #{tpu_custom_call.1} parent=27 // pred_check
        %p225 = pneg %p84
      $region38: #{tpu_custom_call.1} parent=27 // pred_check_branch
        %227 = sbr.rel (%p225) target = $region40
      $region39: #{tpu_custom_call.1} parent=27 // pred_region
        %s228 = smul.u32 8, %s12
        %p229 = scmp.lt.s32.totalorder %s228, 15
        %s230 = scalar_select %p229, %s228, 15
        %s231 = smul.addr %s230, 8
        %s232 = scalar_lea.vmem %s2, %s231
        %s233 = smul.u32 8, %s12
      $region40: #{tpu_custom_call.1} parent=27 // pred_fallthru
        _
    $region28: #{tpu_custom_call.1} parent=5 // pred_fallthru
      _
    %p234 = scmp.le.s32.totalorder 1, %s12
    %p235 = scmp.lt.s32.totalorder %s12, 3
    %p236 = pnand %p234, %p235
    %p237 = pneg %p236
    // Predicated region
    $region41: #{tpu_custom_call.1} parent=5 // pred_check
      _
    $region42: #{tpu_custom_call.1} parent=5 // pred_check_branch
      %239 = sbr.rel (%p236) target = $region44
    $region43: #{tpu_custom_call.1} parent=5 // pred_region
      %s240 = ssub.s32 %s12, 1
      %s241 = smul.u32 8, %s17
      %p242 = scmp.lt.s32.totalorder %s241, 15
      %s243 = scalar_select %p242, %s241, 15
      %s244 = smul.addr %s243, 8
      %s245 = scalar_lea.vmem %s0, %s244
      %p246 = pneg %p38
      %p247 = pneg %p35
      %s248 = smul.u32 8, %s17
      %p249 = scmp.lt.s32.totalorder %s248, 15
      %s250 = scalar_select %p249, %s248, 15
      %s251 = smul.addr %s250, 8
      %s252 = scalar_lea.vmem %s1, %s251
      %p253 = pneg %p64
      %p254 = pneg %p61
      %s255 = smul.u32 8, %s17
      %p256 = scmp.lt.s32.totalorder %s255, 15
      %s257 = scalar_select %p256, %s255, 15
      %s258 = smul.addr %s257, 8
      %s259 = scalar_lea.vmem %s2, %s258
      %p260 = pneg %p90
      %p261 = pneg %p87
      %p262 = pneg %p111
      %p263 = pneg %p108
      %p264 = pneg %p132
      %p265 = pneg %p129
      %p266 = pneg %p153
      %p267 = pneg %p150
      %p268 = pneg %p179
      %p269 = pneg %p176
      %s270 = smul.u32 8, %s17
      %p271 = scmp.lt.s32.totalorder %s270, 15
      %s272 = scalar_select %p271, %s270, 15
      %s273 = smul.addr %s272, 8
      %s274 = scalar_lea.vmem %s6, %s273
      %s275 = smul.u32 8, %s17
      %p276 = scmp.lt.s32.totalorder %s275, 15
      %s277 = scalar_select %p276, %s275, 15
      %s278 = smul.addr %s277, 8
      %s279 = scalar_lea.vmem %s0, %s278
      %s280 = smul.u32 8, %s17
      %s281 = smul.u32 8, %s17
      %p282 = scmp.lt.s32.totalorder %s281, 15
      %s283 = scalar_select %p282, %s281, 15
      %s284 = smul.addr %s283, 8
      %s285 = scalar_lea.vmem %s1, %s284
      %s286 = smul.u32 8, %s17
      %s287 = smul.u32 8, %s17
      %p288 = scmp.lt.s32.totalorder %s287, 15
      %s289 = scalar_select %p288, %s287, 15
      %s290 = smul.addr %s289, 8
      %s291 = scalar_lea.vmem %s2, %s290
      %s292 = smul.u32 8, %s17
      %s293 = smul.u32 8, %s17
      %p294 = scmp.lt.s32.totalorder %s293, 15
      %s295 = scalar_select %p294, %s293, 15
      %s296 = smul.addr %s295, 8
      %s297 = scalar_lea.vmem %s6, %s296
      %s298 = smul.u32 8, %s17
      %v300 = vld [vmem:[%s279] sm:$0xff]
      %v301 = vld [vmem:[%s279 + $0x8] sm:$0xff]
      %v302 = vld [vmem:[%s279 + $0x10] sm:$0xff]
      %v303 = vld [vmem:[%s279 + $0x18] sm:$0xff]
      %v304 = vld [vmem:[%s279 + $0x20] sm:$0xff]
      %v305 = vld [vmem:[%s279 + $0x28] sm:$0xff]
      %v306 = vld [vmem:[%s279 + $0x30] sm:$0xff]
      %v307 = vld [vmem:[%s279 + $0x38] sm:$0xff]
      %v308 = vld [vmem:[%s285] sm:$0xff]
      %v309 = vld [vmem:[%s285 + $0x8] sm:$0xff]
      %v310 = vld [vmem:[%s285 + $0x10] sm:$0xff]
      %v311 = vld [vmem:[%s285 + $0x18] sm:$0xff]
      %v312 = vld [vmem:[%s285 + $0x20] sm:$0xff]
      %v313 = vld [vmem:[%s285 + $0x28] sm:$0xff]
      %v314 = vld [vmem:[%s285 + $0x30] sm:$0xff]
      %v315 = vld [vmem:[%s285 + $0x38] sm:$0xff]
      %v316 = vld [vmem:[%s291] sm:$0xff]
      %v317 = vld [vmem:[%s291 + $0x8] sm:$0xff]
      %v318 = vld [vmem:[%s291 + $0x10] sm:$0xff]
      %v319 = vld [vmem:[%s291 + $0x18] sm:$0xff]
      %v320 = vld [vmem:[%s291 + $0x20] sm:$0xff]
      %v321 = vld [vmem:[%s291 + $0x28] sm:$0xff]
      %v322 = vld [vmem:[%s291 + $0x30] sm:$0xff]
      %v323 = vld [vmem:[%s291 + $0x38] sm:$0xff]
      %v324 = vpack.c.bf16 %v300, %v300
      %v325 = vpack.c.bf16 %v301, %v301
      %v326 = vpack.c.bf16 %v302, %v302
      %v327 = vpack.c.bf16 %v303, %v303
      %v328 = vpack.c.bf16 %v304, %v304
      %v329 = vpack.c.bf16 %v305, %v305
      %v330 = vpack.c.bf16 %v306, %v306
      %v331 = vpack.c.bf16 %v307, %v307
      %v332 = vpack.c.bf16 %v308, %v308
      %v333 = vpack.c.bf16 %v309, %v309
      %v334 = vpack.c.bf16 %v310, %v310
      %v335 = vpack.c.bf16 %v311, %v311
      %v336 = vpack.c.bf16 %v312, %v312
      %v337 = vpack.c.bf16 %v313, %v313
      %v338 = vpack.c.bf16 %v314, %v314
      %v339 = vpack.c.bf16 %v315, %v315
      %v340 = vpack.c.bf16 %v316, %v316
      %v341 = vpack.c.bf16 %v317, %v317
      %v342 = vpack.c.bf16 %v318, %v318
      %v343 = vpack.c.bf16 %v319, %v319
      %v344 = vpack.c.bf16 %v320, %v320
      %v345 = vpack.c.bf16 %v321, %v321
      %v346 = vpack.c.bf16 %v322, %v322
      %v347 = vpack.c.bf16 %v323, %v323
      %v356 = vunpack.c.l.b16 %v324
      %v357 = vunpack.c.l.b16 %v325
      %v358 = vunpack.c.l.b16 %v326
      %v359 = vunpack.c.l.b16 %v327
      %v360 = vunpack.c.l.b16 %v328
      %v361 = vunpack.c.l.b16 %v329
      %v362 = vunpack.c.l.b16 %v330
      %v363 = vunpack.c.l.b16 %v331
      %v364 = vpack.c.b16 %v357, %v356
      %v365 = vpack.c.b16 %v359, %v358
      %v366 = vpack.c.b16 %v361, %v360
      %v367 = vpack.c.b16 %v363, %v362
      %v376 = vunpack.c.l.b16 %v332
      %v377 = vunpack.c.l.b16 %v333
      %v378 = vunpack.c.l.b16 %v334
      %v379 = vunpack.c.l.b16 %v335
      %v380 = vunpack.c.l.b16 %v336
      %v381 = vunpack.c.l.b16 %v337
      %v382 = vunpack.c.l.b16 %v338
      %v383 = vunpack.c.l.b16 %v339
      %v384 = vpack.c.b16 %v377, %v376
      %v385 = vpack.c.b16 %v379, %v378
      %v386 = vpack.c.b16 %v381, %v380
      %v387 = vpack.c.b16 %v383, %v382
      %388 = vrot.lane.b32.xlu0 %v384, 32
      %v389 = vpop.permute.xlu0 %388
      %390 = vrot.lane.b32.xlu0 %v385, 32
      %v391 = vpop.permute.xlu0 %390
      %392 = vrot.lane.b32.xlu0 %v386, 32
      %v393 = vpop.permute.xlu0 %392
      %394 = vrot.lane.b32.xlu0 %v387, 32
      %v395 = vpop.permute.xlu0 %394
      %v404 = vunpack.c.l.b16 %v340
      %v405 = vunpack.c.l.b16 %v341
      %v406 = vunpack.c.l.b16 %v342
      %v407 = vunpack.c.l.b16 %v343
      %v408 = vunpack.c.l.b16 %v344
      %v409 = vunpack.c.l.b16 %v345
      %v410 = vunpack.c.l.b16 %v346
      %v411 = vunpack.c.l.b16 %v347
      %v412 = vpack.c.b16 %v405, %v404
      %v413 = vpack.c.b16 %v407, %v406
      %v414 = vpack.c.b16 %v409, %v408
      %v415 = vpack.c.b16 %v411, %v410
      %416 = vrot.lane.b32.xlu0 %v412, 64
      %v417 = vpop.permute.xlu0 %416
      %418 = vrot.lane.b32.xlu0 %v413, 64
      %v419 = vpop.permute.xlu0 %418
      %420 = vrot.lane.b32.xlu0 %v414, 64
      %v421 = vpop.permute.xlu0 %420
      %422 = vrot.lane.b32.xlu0 %v415, 64
      %v423 = vpop.permute.xlu0 %422
      %vm424 = vcmask 261120
      %v427 = vsel %vm424, %v364, %v389
      %v430 = vsel %vm424, %v365, %v391
      %v433 = vsel %vm424, %v366, %v393
      %v436 = vsel %vm424, %v367, %v395
      %vm437 = vcmask 523264
      %v439 = vsel %vm437, %v427, %v417
      %v441 = vsel %vm437, %v430, %v419
      %v443 = vsel %vm437, %v433, %v421
      %v445 = vsel %vm437, %v436, %v423
      %v446 = vld [vmem:[%s3] sm:$0xf]
      %v447 = vld [vmem:[%s3 + $0x4] sm:$0xf]
      %v448 = vld [vmem:[%s3 + $0x8] sm:$0xf]
      %v449 = vld [vmem:[%s3 + $0xc] sm:$0xf]
      %v450 = vld [vmem:[%s3 + $0x10] sm:$0xf]
      %v451 = vld [vmem:[%s3 + $0x14] sm:$0xf]
      %v452 = vld [vmem:[%s3 + $0x18] sm:$0xf]
      %v453 = vld [vmem:[%s3 + $0x1c] sm:$0xf]
      %v454 = vld [vmem:[%s3 + $0x20] sm:$0xf]
      %v455 = vld [vmem:[%s3 + $0x24] sm:$0xf]
      %v456 = vld [vmem:[%s3 + $0x28] sm:$0xf]
      %v457 = vld [vmem:[%s3 + $0x2c] sm:$0xf]
      %v458 = vld [vmem:[%s5] sm:$0x1]
      %v459 = vperm.slane %v458, 0
      %v472 = vunpack.c.l.b16 %v446
      %v473 = vunpack.c.l.b16 %v447
      %v474 = vunpack.c.l.b16 %v448
      %v475 = vunpack.c.l.b16 %v449
      %v476 = vunpack.c.l.b16 %v450
      %v477 = vunpack.c.l.b16 %v451
      %v478 = vunpack.c.l.b16 %v452
      %v479 = vunpack.c.l.b16 %v453
      %v480 = vunpack.c.l.b16 %v454
      %v481 = vunpack.c.l.b16 %v455
      %v482 = vunpack.c.l.b16 %v456
      %v483 = vunpack.c.l.b16 %v457
      %v484 = vpack.c.b16 %v473, %v472
      %v485 = vpack.c.b16 %v475, %v474
      %v486 = vpack.c.b16 %v477, %v476
      %v487 = vpack.c.b16 %v479, %v478
      %v488 = vpack.c.b16 %v481, %v480
      %v489 = vpack.c.b16 %v483, %v482
      %vm496 = vcmask 785408
      %v497 = vsel %vm496, %v439, 0
      %v499 = vsel %vm496, %v441, 0
      %v501 = vsel %vm496, %v443, 0
      %v503 = vsel %vm496, %v445, 0
      %505 = vmatpush.bf16.msra.mxu0 0
      %506 = vmatpush.bf16.msra.mxu0 0
      %507 = vmatpush.bf16.msra.mxu0 %v489
      %508 = vmatpush.bf16.msra.mxu0 %v488
      %509 = vmatpush.bf16.msra.mxu0 %v487
      %510 = vmatpush.bf16.msra.mxu0 %v486
      %511 = vmatpush.bf16.msra.mxu0 %v485
      %512 = vmatpush.bf16.msra.mxu0 %v484
      %513 = vmatmul.bf16.gmra.mxu0 %v497
      %v514 = vpop.f32.mrf.mxu0
      %v515 = vadd.f32 %v459, %v514
      %v516 = vpop.f32.mrf.mxu0
      %v517 = vadd.f32 %v459, %v516
      %518 = vmatmul.bf16.gmra.mxu0 %v499
      %v519 = vpop.f32.mrf.mxu0
      %v520 = vadd.f32 %v459, %v519
      %v521 = vpop.f32.mrf.mxu0
      %v522 = vadd.f32 %v459, %v521
      %523 = vmatmul.bf16.gmra.mxu0 %v501
      %v524 = vpop.f32.mrf.mxu0
      %v525 = vadd.f32 %v459, %v524
      %v526 = vpop.f32.mrf.mxu0
      %v527 = vadd.f32 %v459, %v526
      %528 = vmatmul.bf16.gmra.mxu0 %v503
      %v529 = vpop.f32.mrf.mxu0
      %v530 = vadd.f32 %v459, %v529
      %v531 = vpop.f32.mrf.mxu0
      %v532 = vadd.f32 %v459, %v531
      %533 = vdwg.mxu0
      %v534 = vmax.f32 %v515, 0.0
      %v535 = vmax.f32 %v517, 0.0
      %v536 = vmax.f32 %v520, 0.0
      %v537 = vmax.f32 %v522, 0.0
      %v538 = vmax.f32 %v525, 0.0
      %v539 = vmax.f32 %v527, 0.0
      %v540 = vmax.f32 %v530, 0.0
      %v541 = vmax.f32 %v532, 0.0
      %v542 = vpack.c.bf16 %v535, %v534
      %v543 = vpack.c.bf16 %v537, %v536
      %v544 = vpack.c.bf16 %v539, %v538
      %v545 = vpack.c.bf16 %v541, %v540
      %v546 = vld [vmem:[%s4] sm:$0xf]
      %v547 = vld [vmem:[%s4 + $0x4] sm:$0xf]
      %v548 = vld [vmem:[%s4 + $0x8] sm:$0xf]
      %v549 = vld [vmem:[%s4 + $0xc] sm:$0xf]
      %v550 = vld [vmem:[%s5 + $0x1] sm:$0x1]
      %v551 = vperm.slane %v550, 0
      %v556 = vunpack.c.l.b16 %v546
      %v557 = vunpack.c.l.b16 %v547
      %v558 = vunpack.c.l.b16 %v548
      %v559 = vunpack.c.l.b16 %v549
      %v560 = vpack.c.b16 %v557, %v556
      %v561 = vpack.c.b16 %v559, %v558
      %v565 = vsel %vm424, %v542, 0
      %v568 = vsel %vm424, %v543, 0
      %v571 = vsel %vm424, %v544, 0
      %v574 = vsel %vm424, %v545, 0
      %576 = vmatpush.bf16.msra.mxu0 0
      %577 = vmatpush.bf16.msra.mxu0 0
      %578 = vmatpush.bf16.msra.mxu0 0
      %579 = vmatpush.bf16.msra.mxu0 0
      %580 = vmatpush.bf16.msra.mxu0 0
      %581 = vmatpush.bf16.msra.mxu0 0
      %582 = vmatpush.bf16.msra.mxu0 %v561
      %583 = vmatpush.bf16.msra.mxu0 %v560
      %584 = vmatmul.bf16.gmra.mxu0 %v565
      %v585 = vpop.f32.mrf.mxu0
      %v586 = vadd.f32 %v551, %v585
      %v587 = vpop.f32.mrf.mxu0
      %v588 = vadd.f32 %v551, %v587
      %589 = vmatmul.bf16.gmra.mxu0 %v568
      %v590 = vpop.f32.mrf.mxu0
      %v591 = vadd.f32 %v551, %v590
      %v592 = vpop.f32.mrf.mxu0
      %v593 = vadd.f32 %v551, %v592
      %594 = vmatmul.bf16.gmra.mxu0 %v571
      %v595 = vpop.f32.mrf.mxu0
      %v596 = vadd.f32 %v551, %v595
      %v597 = vpop.f32.mrf.mxu0
      %v598 = vadd.f32 %v551, %v597
      %599 = vmatmul.bf16.gmra.mxu0 %v574
      %v600 = vpop.f32.mrf.mxu0
      %v601 = vadd.f32 %v551, %v600
      %v602 = vpop.f32.mrf.mxu0
      %v603 = vadd.f32 %v551, %v602
      %604 = vdwg.mxu0
      %v605 = vmax.f32 %v586, 0.0
      %v606 = vmax.f32 %v588, 0.0
      %v607 = vmax.f32 %v591, 0.0
      %v608 = vmax.f32 %v593, 0.0
      %v609 = vmax.f32 %v596, 0.0
      %v610 = vmax.f32 %v598, 0.0
      %v611 = vmax.f32 %v601, 0.0
      %v612 = vmax.f32 %v603, 0.0
      %v613 = vpack.c.bf16 %v606, %v605
      %v614 = vpack.c.bf16 %v608, %v607
      %v615 = vpack.c.bf16 %v610, %v609
      %v616 = vpack.c.bf16 %v612, %v611
      %s617 = scalar_lea.vmem %s4, 16
      %v618 = vld [vmem:[%s617] sm:$0xf]
      %v619 = vld [vmem:[%s617 + $0x4] sm:$0xf]
      %v620 = vld [vmem:[%s617 + $0x8] sm:$0xf]
      %v621 = vld [vmem:[%s617 + $0xc] sm:$0xf]
      %v622 = vld [vmem:[%s5 + $0x2] sm:$0x1]
      %v623 = vperm.slane %v622, 0
      %v628 = vunpack.c.l.b16 %v618
      %v629 = vunpack.c.l.b16 %v619
      %v630 = vunpack.c.l.b16 %v620
      %v631 = vunpack.c.l.b16 %v621
      %v632 = vpack.c.b16 %v629, %v628
      %v633 = vpack.c.b16 %v631, %v630
      %v637 = vsel %vm424, %v613, 0
      %v640 = vsel %vm424, %v614, 0
      %v643 = vsel %vm424, %v615, 0
      %v646 = vsel %vm424, %v616, 0
      %648 = vmatpush.bf16.msra.mxu0 0
      %649 = vmatpush.bf16.msra.mxu0 0
      %650 = vmatpush.bf16.msra.mxu0 0
      %651 = vmatpush.bf16.msra.mxu0 0
      %652 = vmatpush.bf16.msra.mxu0 0
      %653 = vmatpush.bf16.msra.mxu0 0
      %654 = vmatpush.bf16.msra.mxu0 %v633
      %655 = vmatpush.bf16.msra.mxu0 %v632
      %656 = vmatmul.bf16.gmra.mxu0 %v637
      %v657 = vpop.f32.mrf.mxu0
      %v658 = vadd.f32 %v623, %v657
      %v659 = vpop.f32.mrf.mxu0
      %v660 = vadd.f32 %v623, %v659
      %661 = vmatmul.bf16.gmra.mxu0 %v640
      %v662 = vpop.f32.mrf.mxu0
      %v663 = vadd.f32 %v623, %v662
      %v664 = vpop.f32.mrf.mxu0
      %v665 = vadd.f32 %v623, %v664
      %666 = vmatmul.bf16.gmra.mxu0 %v643
      %v667 = vpop.f32.mrf.mxu0
      %v668 = vadd.f32 %v623, %v667
      %v669 = vpop.f32.mrf.mxu0
      %v670 = vadd.f32 %v623, %v669
      %671 = vmatmul.bf16.gmra.mxu0 %v646
      %v672 = vpop.f32.mrf.mxu0
      %v673 = vadd.f32 %v623, %v672
      %v674 = vpop.f32.mrf.mxu0
      %v675 = vadd.f32 %v623, %v674
      %676 = vdwg.mxu0
      %v677 = vld [vmem:[%s5 + $0x3] sm:$0x1]
      %v678 = vld [vmem:[%s5 + $0x4] sm:$0x1]
      %v679 = vsel %vm424, %v658, 0.0
      %680 = vadd.xlane.f32.xlu0 %v679
      %v681 = vpop.xlane.xlu0 %680
      %v682 = vsel %vm424, %v660, 0.0
      %683 = vadd.xlane.f32.xlu0 %v682
      %v684 = vpop.xlane.xlu0 %683
      %v685 = vsel %vm424, %v663, 0.0
      %686 = vadd.xlane.f32.xlu0 %v685
      %v687 = vpop.xlane.xlu0 %686
      %v688 = vsel %vm424, %v665, 0.0
      %689 = vadd.xlane.f32.xlu0 %v688
      %v690 = vpop.xlane.xlu0 %689
      %v691 = vsel %vm424, %v668, 0.0
      %692 = vadd.xlane.f32.xlu0 %v691
      %v693 = vpop.xlane.xlu0 %692
      %v694 = vsel %vm424, %v670, 0.0
      %695 = vadd.xlane.f32.xlu0 %v694
      %v696 = vpop.xlane.xlu0 %695
      %v697 = vsel %vm424, %v673, 0.0
      %698 = vadd.xlane.f32.xlu0 %v697
      %v699 = vpop.xlane.xlu0 %698
      %v700 = vsel %vm424, %v675, 0.0
      %701 = vadd.xlane.f32.xlu0 %v700
      %v702 = vpop.xlane.xlu0 %701
      %v703 = vrcp.pop 32.0
      %v704 = vmul.f32 32.0, %v703
      %v705 = vsub.f32 1.0, %v704
      %v706 = vmul.f32 %v703, %v705
      %v707 = vadd.f32 %v703, %v706
      %vm708 = vweird.f32 %v703
      %v709 = vsel %vm708, %v703, %v707
      %v710 = vmul.f32 %v681, %v709
      %v711 = vmul.f32 %v684, %v709
      %v712 = vmul.f32 %v687, %v709
      %v713 = vmul.f32 %v690, %v709
      %v714 = vmul.f32 %v693, %v709
      %v715 = vmul.f32 %v696, %v709
      %v716 = vmul.f32 %v699, %v709
      %v717 = vmul.f32 %v702, %v709
      %v718 = vsub.f32 %v658, %v710
      %v719 = vsub.f32 %v660, %v711
      %v720 = vsub.f32 %v663, %v712
      %v721 = vsub.f32 %v665, %v713
      %v722 = vsub.f32 %v668, %v714
      %v723 = vsub.f32 %v670, %v715
      %v724 = vsub.f32 %v673, %v716
      %v725 = vsub.f32 %v675, %v717
      %v726 = vmul.f32 %v718, %v718
      %v727 = vmul.f32 %v719, %v719
      %v728 = vmul.f32 %v720, %v720
      %v729 = vmul.f32 %v721, %v721
      %v730 = vmul.f32 %v722, %v722
      %v731 = vmul.f32 %v723, %v723
      %v732 = vmul.f32 %v724, %v724
      %v733 = vmul.f32 %v725, %v725
      %v734 = vsel %vm424, %v726, 0.0
      %735 = vadd.xlane.f32.xlu0 %v734
      %v736 = vpop.xlane.xlu0 %735
      %v737 = vsel %vm424, %v727, 0.0
      %738 = vadd.xlane.f32.xlu0 %v737
      %v739 = vpop.xlane.xlu0 %738
      %v740 = vsel %vm424, %v728, 0.0
      %741 = vadd.xlane.f32.xlu0 %v740
      %v742 = vpop.xlane.xlu0 %741
      %v743 = vsel %vm424, %v729, 0.0
      %744 = vadd.xlane.f32.xlu0 %v743
      %v745 = vpop.xlane.xlu0 %744
      %v746 = vsel %vm424, %v730, 0.0
      %747 = vadd.xlane.f32.xlu0 %v746
      %v748 = vpop.xlane.xlu0 %747
      %v749 = vsel %vm424, %v731, 0.0
      %750 = vadd.xlane.f32.xlu0 %v749
      %v751 = vpop.xlane.xlu0 %750
      %v752 = vsel %vm424, %v732, 0.0
      %753 = vadd.xlane.f32.xlu0 %v752
      %v754 = vpop.xlane.xlu0 %753
      %v755 = vsel %vm424, %v733, 0.0
      %756 = vadd.xlane.f32.xlu0 %v755
      %v757 = vpop.xlane.xlu0 %756
      %v758 = vmul.f32 %v736, %v709
      %v759 = vmul.f32 %v739, %v709
      %v760 = vmul.f32 %v742, %v709
      %v761 = vmul.f32 %v745, %v709
      %v762 = vmul.f32 %v748, %v709
      %v763 = vmul.f32 %v751, %v709
      %v764 = vmul.f32 %v754, %v709
      %v765 = vmul.f32 %v757, %v709
      %v766 = vadd.f32 %v758, 1e-05
      %v767 = vadd.f32 %v759, 1e-05
      %v768 = vadd.f32 %v760, 1e-05
      %v769 = vadd.f32 %v761, 1e-05
      %v770 = vadd.f32 %v762, 1e-05
      %v771 = vadd.f32 %v763, 1e-05
      %v772 = vadd.f32 %v764, 1e-05
      %v773 = vadd.f32 %v765, 1e-05
      %v774 = vrsqrt.pop %v766
      %v775 = vmul.f32 %v774, %v766
      %v776 = vmul.f32 %v775, %v774
      %v777 = vmul.f32 0.5, %v776
      %v778 = vsub.f32 1.5, %v777
      %v779 = vmul.f32 %v774, %v778
      %vm780 = vweird.f32 %v766
      %vm781 = vweird.f32 %v774
      %vm782 = vmor %vm780, %vm781
      %v783 = vsel %vm782, %v774, %v779
      %v784 = vrsqrt.pop %v767
      %v785 = vmul.f32 %v784, %v767
      %v786 = vmul.f32 %v785, %v784
      %v787 = vmul.f32 0.5, %v786
      %v788 = vsub.f32 1.5, %v787
      %v789 = vmul.f32 %v784, %v788
      %vm790 = vweird.f32 %v767
      %vm791 = vweird.f32 %v784
      %vm792 = vmor %vm790, %vm791
      %v793 = vsel %vm792, %v784, %v789
      %v794 = vrsqrt.pop %v768
      %v795 = vmul.f32 %v794, %v768
      %v796 = vmul.f32 %v795, %v794
      %v797 = vmul.f32 0.5, %v796
      %v798 = vsub.f32 1.5, %v797
      %v799 = vmul.f32 %v794, %v798
      %vm800 = vweird.f32 %v768
      %vm801 = vweird.f32 %v794
      %vm802 = vmor %vm800, %vm801
      %v803 = vsel %vm802, %v794, %v799
      %v804 = vrsqrt.pop %v769
      %v805 = vmul.f32 %v804, %v769
      %v806 = vmul.f32 %v805, %v804
      %v807 = vmul.f32 0.5, %v806
      %v808 = vsub.f32 1.5, %v807
      %v809 = vmul.f32 %v804, %v808
      %vm810 = vweird.f32 %v769
      %vm811 = vweird.f32 %v804
      %vm812 = vmor %vm810, %vm811
      %v813 = vsel %vm812, %v804, %v809
      %v814 = vrsqrt.pop %v770
      %v815 = vmul.f32 %v814, %v770
      %v816 = vmul.f32 %v815, %v814
      %v817 = vmul.f32 0.5, %v816
      %v818 = vsub.f32 1.5, %v817
      %v819 = vmul.f32 %v814, %v818
      %vm820 = vweird.f32 %v770
      %vm821 = vweird.f32 %v814
      %vm822 = vmor %vm820, %vm821
      %v823 = vsel %vm822, %v814, %v819
      %v824 = vrsqrt.pop %v771
      %v825 = vmul.f32 %v824, %v771
      %v826 = vmul.f32 %v825, %v824
      %v827 = vmul.f32 0.5, %v826
      %v828 = vsub.f32 1.5, %v827
      %v829 = vmul.f32 %v824, %v828
      %vm830 = vweird.f32 %v771
      %vm831 = vweird.f32 %v824
      %vm832 = vmor %vm830, %vm831
      %v833 = vsel %vm832, %v824, %v829
      %v834 = vrsqrt.pop %v772
      %v835 = vmul.f32 %v834, %v772
      %v836 = vmul.f32 %v835, %v834
      %v837 = vmul.f32 0.5, %v836
      %v838 = vsub.f32 1.5, %v837
      %v839 = vmul.f32 %v834, %v838
      %vm840 = vweird.f32 %v772
      %vm841 = vweird.f32 %v834
      %vm842 = vmor %vm840, %vm841
      %v843 = vsel %vm842, %v834, %v839
      %v844 = vrsqrt.pop %v773
      %v845 = vmul.f32 %v844, %v773
      %v846 = vmul.f32 %v845, %v844
      %v847 = vmul.f32 0.5, %v846
      %v848 = vsub.f32 1.5, %v847
      %v849 = vmul.f32 %v844, %v848
      %vm850 = vweird.f32 %v773
      %vm851 = vweird.f32 %v844
      %vm852 = vmor %vm850, %vm851
      %v853 = vsel %vm852, %v844, %v849
      %v854 = vmul.f32 %v718, %v783
      %v855 = vmul.f32 %v719, %v793
      %v856 = vmul.f32 %v720, %v803
      %v857 = vmul.f32 %v721, %v813
      %v858 = vmul.f32 %v722, %v823
      %v859 = vmul.f32 %v723, %v833
      %v860 = vmul.f32 %v724, %v843
      %v861 = vmul.f32 %v725, %v853
      %v862 = vperm.slane %v677, 0
      %v863 = vmul.f32 %v854, %v862
      %v864 = vmul.f32 %v855, %v862
      %v865 = vmul.f32 %v856, %v862
      %v866 = vmul.f32 %v857, %v862
      %v867 = vmul.f32 %v858, %v862
      %v868 = vmul.f32 %v859, %v862
      %v869 = vmul.f32 %v860, %v862
      %v870 = vmul.f32 %v861, %v862
      %v871 = vperm.slane %v678, 0
      %v872 = vadd.f32 %v863, %v871
      %v873 = vadd.f32 %v864, %v871
      %v874 = vadd.f32 %v865, %v871
      %v875 = vadd.f32 %v866, %v871
      %v876 = vadd.f32 %v867, %v871
      %v877 = vadd.f32 %v868, %v871
      %v878 = vadd.f32 %v869, %v871
      %v879 = vadd.f32 %v870, %v871
      %v880 = vadd.f32 %v316, %v872
      %v881 = vadd.f32 %v317, %v873
      %v882 = vadd.f32 %v318, %v874
      %v883 = vadd.f32 %v319, %v875
      %v884 = vadd.f32 %v320, %v876
      %v885 = vadd.f32 %v321, %v877
      %v886 = vadd.f32 %v322, %v878
      %v887 = vadd.f32 %v323, %v879
      %888 = vst.msk [vmem:[%s297] sm:$0xff] %vm424, %v880
      %889 = vst.msk [vmem:[%s297 + $0x8] sm:$0xff] %vm424, %v881
      %890 = vst.msk [vmem:[%s297 + $0x10] sm:$0xff] %vm424, %v882
      %891 = vst.msk [vmem:[%s297 + $0x18] sm:$0xff] %vm424, %v883
      %892 = vst.msk [vmem:[%s297 + $0x20] sm:$0xff] %vm424, %v884
      %893 = vst.msk [vmem:[%s297 + $0x28] sm:$0xff] %vm424, %v885
      %894 = vst.msk [vmem:[%s297 + $0x30] sm:$0xff] %vm424, %v886
      %895 = vst.msk [vmem:[%s297 + $0x38] sm:$0xff] %vm424, %v887
      %s896 = smul.u32 8, %s17
      %p897 = scmp.lt.s32.totalorder %s896, 15
      %s898 = scalar_select %p897, %s896, 15
      %s899 = smul.addr %s898, 8
      %s900 = scalar_lea.vmem %s6, %s899
      // Predicated region
      $region45: #{tpu_custom_call.1} parent=43 // pred_check
        %p901 = pneg %p176
      $region46: #{tpu_custom_call.1} parent=43 // pred_check_branch
        %903 = sbr.rel (%p901) target = $region48
      $region47: #{tpu_custom_call.1} parent=43 // pred_region
        %s904 = smul.u32 8, %s17
      $region48: #{tpu_custom_call.1} parent=43 // pred_fallthru
        _
    $region44: #{tpu_custom_call.1} parent=5 // pred_fallthru
      _
    %p905 = scmp.le.s32.totalorder 2, %s12
    // Predicated region
    $region49: #{tpu_custom_call.1} parent=5 // pred_check
      %p906 = pneg %p905
    $region50: #{tpu_custom_call.1} parent=5 // pred_check_branch
      %908 = sbr.rel (%p906) target = $region52
    $region51: #{tpu_custom_call.1} parent=5 // pred_region
      %s909 = ssub.s32 %s12, 2
      // Predicated region
      $region53: #{tpu_custom_call.1} parent=51 // pred_check
        %p910 = pneg %p182
      $region54: #{tpu_custom_call.1} parent=51 // pred_check_branch
        %912 = sbr.rel (%p910) target = $region56
      $region55: #{tpu_custom_call.1} parent=51 // pred_region
        %s913 = smul.u32 8, %s18
        %p914 = scmp.lt.s32.totalorder %s913, 15
        %s915 = scalar_select %p914, %s913, 15
        %s916 = smul.addr %s915, 8
        %s917 = scalar_lea.vmem %s6, %s916
      $region56: #{tpu_custom_call.1} parent=51 // pred_fallthru
        _
    $region52: #{tpu_custom_call.1} parent=5 // pred_fallthru
      _
  $region6: #{tpu_custom_call.1} parent=0 // loop_footer
    %s16 = sadd.s32 1, %s12
  $region7: #{tpu_custom_call.1} parent=0 // loop_footer_branch
    %11 = sbr.rel target = $region3
  $region8: #{tpu_custom_call.1} parent=0 // loop_exit
    _

</llo_original>
